<compile_context>
chip_gen: v6e
topology: v6e:2x2x1
jax: 0.10.0
libtpu: 0.0.40
codegen_flags: <defaults>
</compile_context>

<pallas_src>
import functools

import jax
import jax.numpy as jnp
from jax.experimental import pallas as pl
from jax.experimental.pallas import tpu as pltpu

_MiB = 1024 * 1024


def _round_up(x, m):
    return (x + m - 1) // m * m


def _tpu_vmem_capacity_bytes():
    try:
        return int(pltpu.get_tpu_info().vmem_capacity_bytes)
    except Exception:
        return 64 * _MiB  # conservative default (v7x per-TensorCore VMEM)


# ---------------------------------------------------------------------------
# Kernel
# ---------------------------------------------------------------------------
def mlp_kernel(x_ref, w1_ref, b1_ref, w2_ref, b2_ref, o_ref):
    # x arrives in its native dtype (f32); cast to bf16 on the VPU right under
    # the MXU so HBM only pays 4 B/elem for x (no separate wrapper cast pass).
    x = x_ref[...].astype(jnp.bfloat16)
    # fc1: bf16 x bf16 -> f32 accumulate on the MXU.
    h = jnp.dot(x, w1_ref[...], preferred_element_type=jnp.float32)
    # Bias + ReLU epilogue in f32 (keeps v5e off emulated-bf16 VPU paths).
    h = jnp.maximum(h + b1_ref[...], 0.0)
    # fc2: bf16 activations, f32 accumulate.
    out = jnp.dot(h.astype(jnp.bfloat16), w2_ref[...],
                  preferred_element_type=jnp.float32)
    out = out + b2_ref[...]
    o_ref[...] = out.astype(o_ref.dtype)


# ---------------------------------------------------------------------------
# One-time parameter preparation (pad + bf16 cast, done at creation time)
# ---------------------------------------------------------------------------
def prepare_mlp_params(w1, b1, w2, b2, *, lane_align=128):
    """Pack nn.Linear params for the fused kernel (call once, reuse).

    w1: (in, hid), b1: (1, hid), w2: (hid, out), b2: (1, out)  [pre-transposed].
    Pads hidden/output feature dims to `lane_align` (128; use 256 for very wide
    outputs on v6e/v7x to better fill the 256-wide MXU) and casts weights bf16.
    Zero padding is exact: padded hidden units ReLU to 0 and hit zero w2 rows.
    """
    in_f, hid = w1.shape
    out_f = w2.shape[1]
    hid_p = _round_up(max(hid, 1), lane_align)
    out_p = _round_up(max(out_f, 1), lane_align)
    w1p = jnp.pad(w1, ((0, 0), (0, hid_p - hid))).astype(jnp.bfloat16)
    b1p = jnp.pad(b1.reshape(1, -1), ((0, 0), (0, hid_p - hid))).astype(jnp.float32)
    w2p = jnp.pad(w2, ((0, hid_p - hid), (0, out_p - out_f))).astype(jnp.bfloat16)
    b2p = jnp.pad(b2.reshape(1, -1), ((0, 0), (0, out_p - out_f))).astype(jnp.float32)
    return w1p, b1p, w2p, b2p


# ---------------------------------------------------------------------------
# VMEM accounting (padded-layout units) and batch-tile selection
# ---------------------------------------------------------------------------
def _vmem_bytes(tile_b, in_f, hid_p, out_p, x_itemsize, out_itemsize):
    BF16, F32 = 2, 4
    in_lane = _round_up(in_f, 128)          # lane padding of the x tile
    tb = _round_up(tile_b, 8)               # sublane padding of the batch tile
    # Weights/biases: constant (0,0) index maps, single-buffered (Buffered(1)).
    fixed = ((_round_up(in_f, 16) * hid_p + _round_up(hid_p, 16) * out_p) * BF16
             + (8 * hid_p + 8 * out_p) * F32)
    # Streaming x / out tiles: double-buffered by the pipeline.
    stream = 2 * tb * (in_lane * x_itemsize + out_p * out_itemsize)
    # In-kernel temporaries: bf16 x, f32 + bf16 h, f32 out.
    temps = tb * (in_lane * BF16 + hid_p * (F32 + BF16) + out_p * F32)
    return fixed + stream + temps


def _pick_tile_b(batch, in_f, hid_p, out_p, x_itemsize, out_itemsize,
                 budget_bytes, two_cores):
    candidates = [t for t in (1024, 512, 256, 128, 64, 32, 16, 8) if t <= batch]
    if not candidates:
        candidates = [max(batch, 1)]
    fits = [t for t in candidates
            if _vmem_bytes(t, in_f, hid_p, out_p, x_itemsize, out_itemsize)
            <= budget_bytes]
    if not fits:
        # Weights alone dominate the budget; take the smallest batch tile and
        # let the caller raise vmem_limit_bytes from the real footprint.
        return min(candidates)
    # Want >= 2 pipelined grid steps (>= 2 per TensorCore on dual-core parts)
    # whenever the batch is big enough for that to matter.
    min_steps = 4 if (two_cores and batch >= 4 * min(fits)) else 2
    pipelined = [t for t in fits if pl.cdiv(batch, t) >= min_steps]
    pool = pipelined if pipelined else fits
    # Prefer tiles that divide the batch exactly -> no jnp.pad pass over x.
    divisors = [t for t in pool if batch % t == 0]
    return max(divisors) if divisors else max(pool)


def _weight_spec(shape):
    # Resident operand (constant index map): single-buffer it when supported.
    try:
        return pl.BlockSpec(shape, lambda i: (0, 0), pipeline_mode=pl.Buffered(1))
    except (TypeError, AttributeError):
        return pl.BlockSpec(shape, lambda i: (0, 0))


# ---------------------------------------------------------------------------
# Forward wrapper
# ---------------------------------------------------------------------------
@functools.partial(jax.jit, static_argnames=("output_size", "tile_b"))
def mlp_forward(x, w1p, b1p, w2p, b2p, *, output_size, tile_b=None):
    """relu(x @ w1 + b1) @ w2 + b2, params from prepare_mlp_params."""
    batch, input_size = x.shape
    hid_p = w1p.shape[1]
    out_p = w2p.shape[1]
    out_dtype = x.dtype

    x_itemsize = jnp.dtype(x.dtype).itemsize
    out_itemsize = jnp.dtype(out_dtype).itemsize

    # Generation-aware VMEM budget: ~40/48 MiB on 64 MiB/TC parts (v7x),
    # ~96/104 MiB on 128 MiB parts (v5e/v6e).
    cap = _tpu_vmem_capacity_bytes()
    small_vmem = cap <= 80 * _MiB
    budget = 40 * _MiB if small_vmem else 96 * _MiB
    base_limit = 48 * _MiB if small_vmem else 104 * _MiB

    if tile_b is None:
        tile_b = _pick_tile_b(batch, input_size, hid_p, out_p,
                              x_itemsize, out_itemsize,
                              budget_bytes=budget, two_cores=small_vmem)

    need = _vmem_bytes(tile_b, input_size, hid_p, out_p, x_itemsize, out_itemsize)
    vmem_limit = int(min(cap * 9 // 10, max(base_limit, need * 3 // 2)))

    # Pad the batch only if tile_b does not divide it (picker prefers divisors).
    batch_p = _round_up(batch, tile_b)
    if batch_p != batch:
        x = jnp.pad(x, ((0, batch_p - batch), (0, 0)))

    grid = (batch_p // tile_b,)

    flops = 2 * batch_p * (input_size * hid_p + hid_p * out_p)
    bytes_accessed = (batch_p * input_size * x_itemsize
                      + batch_p * out_p * out_itemsize
                      + (input_size * hid_p + hid_p * out_p) * 2
                      + (hid_p + out_p) * 4)

    out = pl.pallas_call(
        mlp_kernel,
        out_shape=jax.ShapeDtypeStruct((batch_p, out_p), out_dtype),
        grid_spec=pltpu.PrefetchScalarGridSpec(
            num_scalar_prefetch=0,
            grid=grid,
            in_specs=[
                pl.BlockSpec((tile_b, input_size), lambda i: (i, 0)),
                _weight_spec((input_size, hid_p)),
                _weight_spec((1, hid_p)),
                _weight_spec((hid_p, out_p)),
                _weight_spec((1, out_p)),
            ],
            out_specs=pl.BlockSpec((tile_b, out_p), lambda i: (i, 0)),
        ),
        compiler_params=pltpu.CompilerParams(
            dimension_semantics=("parallel",),
            vmem_limit_bytes=vmem_limit,
        ),
        cost_estimate=pl.CostEstimate(flops=flops, transcendentals=0,
                                      bytes_accessed=bytes_accessed),
    )(x, w1p, b1p, w2p, b2p)

    # Slice off batch + lane padding.
    return out[:batch, :output_size]


def init_linear_params(key, in_features, out_features):
    # Deterministic init mimicking PyTorch nn.Linear: U(-1/sqrt(in), 1/sqrt(in)).
    kw, kb = jax.random.split(key)
    bound = 1.0 / jnp.sqrt(jnp.float32(in_features))
    # Stored pre-transposed: (in_features, out_features).
    w = jax.random.uniform(kw, (in_features, out_features), jnp.float32, -bound, bound)
    b = jax.random.uniform(kb, (1, out_features), jnp.float32, -bound, bound)
    return w, b


if __name__ == "__main__":
    # Small shapes consistent with the module: tabular features -> MLP head.
    batch = 8
    input_size = 32      # X_train.shape[1]
    hidden_size = 10     # as in the module
    output_size = 3      # len(unique(y_train))

    key = jax.random.PRNGKey(0)
    kx, k1, k2 = jax.random.split(key, 3)

    x = jax.random.normal(kx, (batch, input_size), jnp.float32)
    w1, b1 = init_linear_params(k1, input_size, hidden_size)
    w2, b2 = init_linear_params(k2, hidden_size, output_size)

    # One-time parameter packing (pad to lane multiples + bf16 cast).
    w1p, b1p, w2p, b2p = prepare_mlp_params(w1, b1, w2, b2)

    out = mlp_forward(x, w1p, b1p, w2p, b2p, output_size=output_size)
    out = jax.block_until_ready(out)

    # Reference with the same bf16-operand / f32-accumulate precision path.
    xb = x.astype(jnp.bfloat16)
    h_ref = jnp.maximum(
        jnp.dot(xb, w1.astype(jnp.bfloat16), preferred_element_type=jnp.float32) + b1,
        0.0)
    ref = jnp.dot(h_ref.astype(jnp.bfloat16), w2.astype(jnp.bfloat16),
                  preferred_element_type=jnp.float32) + b2

    assert out.shape == (batch, output_size)
    assert jnp.allclose(out, ref, atol=1e-3, rtol=1e-3), float(
        jnp.max(jnp.abs(out - ref)))

    print("KERNEL_OK")
</pallas_src>

<mosaic_0001>
module attributes {stable_mosaic.version = 11 : i64} {
  func.func @mlp_kernel(%arg0: i32, %arg1: memref<8x32xf32, #tpu.memory_space<vmem>>, %arg2: memref<32x128xbf16, #tpu.memory_space<vmem>>, %arg3: memref<1x128xf32, #tpu.memory_space<vmem>>, %arg4: memref<128x128xbf16, #tpu.memory_space<vmem>>, %arg5: memref<1x128xf32, #tpu.memory_space<vmem>>, %arg6: memref<8x128xf32, #tpu.memory_space<vmem>>) attributes {dimension_semantics = [#tpu.dimension_semantics<parallel>], iteration_bounds = array<i64: 1>, scalar_prefetch = 0 : i64, scratch_operands = 0 : i64, tpu.core_type = #tpu.core_type<tc>, window_params = [{transform_indices = @transform_0, window_bounds = array<i64: 8, 32>}, {pipeline_mode = #tpu.pipeline_mode<synchronous>, transform_indices = @transform_1, window_bounds = array<i64: 32, 128>}, {pipeline_mode = #tpu.pipeline_mode<synchronous>, transform_indices = @transform_2, window_bounds = array<i64: 1, 128>}, {pipeline_mode = #tpu.pipeline_mode<synchronous>, transform_indices = @transform_3, window_bounds = array<i64: 128, 128>}, {pipeline_mode = #tpu.pipeline_mode<synchronous>, transform_indices = @transform_4, window_bounds = array<i64: 1, 128>}, {transform_indices = @transform_5, window_bounds = array<i64: 8, 128>}]} {
    %c0 = arith.constant 0 : index
    %c0_0 = arith.constant 0 : index
    %0 = vector.load %arg1[%c0, %c0_0] : memref<8x32xf32, #tpu.memory_space<vmem>>, vector<8x32xf32>
    %1 = arith.truncf %0 : vector<8x32xf32> to vector<8x32xbf16>
    %c0_1 = arith.constant 0 : index
    %c0_2 = arith.constant 0 : index
    %2 = vector.load %arg2[%c0_1, %c0_2] : memref<32x128xbf16, #tpu.memory_space<vmem>>, vector<32x128xbf16>
    %cst = arith.constant dense<0.000000e+00> : vector<8x128xf32>
    %3 = tpu.matmul %1, %2, %cst {dimension_numbers = #tpu.dot_dimension_numbers<[1], [0], [0], [1], [0, 0, 1, 1], [], []>} : vector<8x32xbf16>, vector<32x128xbf16>, vector<8x128xf32> -> vector<8x128xf32>
    %c0_3 = arith.constant 0 : index
    %c0_4 = arith.constant 0 : index
    %4 = vector.load %arg3[%c0_3, %c0_4] : memref<1x128xf32, #tpu.memory_space<vmem>>, vector<1x128xf32>
    %5 = vector.broadcast %4 : vector<1x128xf32> to vector<8x128xf32>
    %6 = arith.addf %3, %5 : vector<8x128xf32>
    %cst_5 = arith.constant 0.000000e+00 : f32
    %7 = vector.broadcast %cst_5 : f32 to vector<8x128xf32>
    %8 = arith.maximumf %6, %7 : vector<8x128xf32>
    %9 = arith.truncf %8 : vector<8x128xf32> to vector<8x128xbf16>
    %c0_6 = arith.constant 0 : index
    %c0_7 = arith.constant 0 : index
    %10 = vector.load %arg4[%c0_6, %c0_7] : memref<128x128xbf16, #tpu.memory_space<vmem>>, vector<128x128xbf16>
    %cst_8 = arith.constant dense<0.000000e+00> : vector<8x128xf32>
    %11 = tpu.matmul %9, %10, %cst_8 {dimension_numbers = #tpu.dot_dimension_numbers<[1], [0], [0], [1], [0, 0, 1, 1], [], []>} : vector<8x128xbf16>, vector<128x128xbf16>, vector<8x128xf32> -> vector<8x128xf32>
    %c0_9 = arith.constant 0 : index
    %c0_10 = arith.constant 0 : index
    %12 = vector.load %arg5[%c0_9, %c0_10] : memref<1x128xf32, #tpu.memory_space<vmem>>, vector<1x128xf32>
    %13 = vector.broadcast %12 : vector<1x128xf32> to vector<8x128xf32>
    %14 = arith.addf %11, %13 : vector<8x128xf32>
    %c0_11 = arith.constant 0 : index
    %c0_12 = arith.constant 0 : index
    %15 = vector.load %arg6[%c0_11, %c0_12] : memref<8x128xf32, #tpu.memory_space<vmem>>, vector<8x128xf32>
    tpu.vector_store %arg6[%c0_11, %c0_12], %14 {strides = array<i32>} : memref<8x128xf32, #tpu.memory_space<vmem>>, vector<8x128xf32>,
    return
  }
  func.func @transform_0(%arg0: i32) -> (i32, i32) {
    %c0_i32 = arith.constant 0 : i32
    %c0_i32_0 = arith.constant 0 : i32
    return %arg0, %c0_i32 : i32, i32
  }
  func.func @transform_1(%arg0: i32) -> (i32, i32) {
    %c0_i32 = arith.constant 0 : i32
    %c0_i32_0 = arith.constant 0 : i32
    %c0_i32_1 = arith.constant 0 : i32
    return %c0_i32, %c0_i32_0 : i32, i32
  }
  func.func @transform_2(%arg0: i32) -> (i32, i32) {
    %c0_i32 = arith.constant 0 : i32
    %c0_i32_0 = arith.constant 0 : i32
    %c0_i32_1 = arith.constant 0 : i32
    return %c0_i32, %c0_i32_0 : i32, i32
  }
  func.func @transform_3(%arg0: i32) -> (i32, i32) {
    %c0_i32 = arith.constant 0 : i32
    %c0_i32_0 = arith.constant 0 : i32
    %c0_i32_1 = arith.constant 0 : i32
    return %c0_i32, %c0_i32_0 : i32, i32
  }
  func.func @transform_4(%arg0: i32) -> (i32, i32) {
    %c0_i32 = arith.constant 0 : i32
    %c0_i32_0 = arith.constant 0 : i32
    %c0_i32_1 = arith.constant 0 : i32
    return %c0_i32, %c0_i32_0 : i32, i32
  }
  func.func @transform_5(%arg0: i32) -> (i32, i32) {
    %c0_i32 = arith.constant 0 : i32
    %c0_i32_0 = arith.constant 0 : i32
    return %arg0, %c0_i32 : i32, i32
  }
}

</mosaic_0001>

<llo_original>
// kernel: mlp_forward.1
$region0: #{mlp_forward.1}
  #allocation0 [shape = 'u32[]', space=smem, size = 0x4, offset = 0x4, fixed_abs, tag = 'smem constant byte address 0x4 - core index']
  #allocation1 [shape = 'u32[144,128]{1,0:T(1,128)}', space=vmem, size = 0x12000, scoped, tag = 'internal scratch']
  %s0 = inlined_call_operand.hbm [shape: f32[8,32], index: 0, kind: input, shape index: {}]
  %s1 = inlined_call_operand.hbm [shape: bf16[32,128], index: 1, kind: input, shape index: {}]
  %s2 = inlined_call_operand.vmem [shape: f32[1,128], index: 2, kind: input, shape index: {}]
  %s3 = inlined_call_operand.hbm [shape: bf16[128,128], index: 3, kind: input, shape index: {}]
  %s4 = inlined_call_operand.vmem [shape: f32[1,128], index: 4, kind: input, shape index: {}]
  %s5 = inlined_call_operand.vmem [shape: f32[8,128], index: 5, kind: output, shape index: {}]
  %s6 = sld [smem:[#allocation0]]
  $region42: #{mlp_forward.1} parent=0
    _
  %s8 = ssub.s32 1, %s6
  %s9 = scalar_select 0, %s8, %s6
  $region1: #{mlp_forward.1} parent=0
    #allocation2 [shape = 'u8[4096]{0}', space=vmem, size = 0x1000, scoped, tag = 'input window, operand 0, single buffered']
    #allocation3 [shape = 's32[1]{0}', space=sflag, size = 0x4, scoped, tag = 'scoped memory for mlp_forward.1']
    #allocation4 [shape = 'u8[8192]{0}', space=vmem, size = 0x2000, scoped, tag = 'input window, operand 1, single buffered']
    #allocation5 [shape = 's32[1]{0}', space=sflag, size = 0x4, scoped, tag = 'scoped memory for mlp_forward.1']
    #allocation6 [shape = 'u8[32768]{0}', space=vmem, size = 0x8000, scoped, tag = 'input window, operand 3, single buffered']
    %10 = vsyncpa [#allocation3], 0
    %11 = vsyncpa [#allocation5], 0
    // Predicated region
    $region2: #{mlp_forward.1} parent=1 // pred_check
      _
    $region3: #{mlp_forward.1} parent=1 // pred_check_branch
      %13 = sbr.rel (0) target = $region5
    $region4: #{mlp_forward.1} parent=1 // pred_region
      %s15 = ssub.s32 128, 128
      %16 = vsyncadd [#allocation3], %s15
      %s18 = sshll.u32 [#allocation2], 4
      %s19 = int_to_ptr.vmem [resolvable:$true] %s18
      %21 = dma.hbm_to_vmem [thread:$0]  %s0, 128, %s19, [#allocation3]
    $region5: #{mlp_forward.1} parent=1 // pred_fallthru
      _
    // Predicated region
    $region6: #{mlp_forward.1} parent=1 // pred_check
      _
    $region7: #{mlp_forward.1} parent=1 // pred_check_branch
      %23 = sbr.rel (0) target = $region9
    $region8: #{mlp_forward.1} parent=1 // pred_region
      %s25 = ssub.s32 256, 256
      %26 = vsyncadd [#allocation5], %s25
      %s27 = sshll.u32 [#allocation4], 4
      %s28 = int_to_ptr.vmem [resolvable:$true] %s27
      %33 = dma.hbm_to_vmem [thread:$0]  %s1, 256, %s28, [#allocation5], 64, 64, 4
    $region9: #{mlp_forward.1} parent=1 // pred_fallthru
      _
    // Predicated region
    $region10: #{mlp_forward.1} parent=1 // pred_check
      _
    $region11: #{mlp_forward.1} parent=1 // pred_check_branch
      %35 = sbr.rel (0) target = $region13
    $region12: #{mlp_forward.1} parent=1 // pred_region
      _
    $region13: #{mlp_forward.1} parent=1 // pred_fallthru
      _
    // Predicated region
    $region14: #{mlp_forward.1} parent=1 // pred_check
      _
    $region15: #{mlp_forward.1} parent=1 // pred_check_branch
      %37 = sbr.rel (0) target = $region17
    $region16: #{mlp_forward.1} parent=1 // pred_region
      %s39 = ssub.s32 1024, 1024
      %40 = vsyncadd [#allocation5], %s39
      %s41 = sshll.u32 [#allocation6], 4
      %s42 = int_to_ptr.vmem [resolvable:$true] %s41
      %47 = dma.hbm_to_vmem [thread:$0]  %s3, 1024, %s42, [#allocation5], 64, 64, 4
    $region17: #{mlp_forward.1} parent=1 // pred_fallthru
      _
    // Predicated region
    $region18: #{mlp_forward.1} parent=1 // pred_check
      _
    $region19: #{mlp_forward.1} parent=1 // pred_check_branch
      %49 = sbr.rel (0) target = $region21
    $region20: #{mlp_forward.1} parent=1 // pred_region
      _
    $region21: #{mlp_forward.1} parent=1 // pred_fallthru
      _
    // Predicated region
    $region22: #{mlp_forward.1} parent=1 // pred_check
      _
    $region23: #{mlp_forward.1} parent=1 // pred_check_branch
      %51 = sbr.rel (0) target = $region25
    $region24: #{mlp_forward.1} parent=1 // pred_region
      %52 = dma.done [#allocation3], 128
    $region25: #{mlp_forward.1} parent=1 // pred_fallthru
      _
    // Predicated region
    $region26: #{mlp_forward.1} parent=1 // pred_check
      _
    $region27: #{mlp_forward.1} parent=1 // pred_check_branch
      %54 = sbr.rel (0) target = $region29
    $region28: #{mlp_forward.1} parent=1 // pred_region
      %55 = dma.done [#allocation5], 256
    $region29: #{mlp_forward.1} parent=1 // pred_fallthru
      _
    // Predicated region
    $region30: #{mlp_forward.1} parent=1 // pred_check
      _
    $region31: #{mlp_forward.1} parent=1 // pred_check_branch
      %57 = sbr.rel (0) target = $region33
    $region32: #{mlp_forward.1} parent=1 // pred_region
      %58 = dma.done [#allocation5], 1024
    $region33: #{mlp_forward.1} parent=1 // pred_fallthru
      _
    %v60 = vld [vmem:[#allocation2] sm:$0xff]
    %v61 = vpack.c.bf16 %v60, %v60
    %v62 = vld [vmem:[#allocation4] sm:$0xf]
    %v63 = vld [vmem:[#allocation4 + $0x4] sm:$0xf]
    %v64 = vld [vmem:[#allocation4 + $0x8] sm:$0xf]
    %v65 = vld [vmem:[#allocation4 + $0xc] sm:$0xf]
    %v66 = vld [vmem:[%s2] sm:$0x1]
    %v68 = vlaneseq
    %v69 = vshrl.u32 %v68, 7
    %v70 = vsub.s32 0, %v69
    %v71 = vrot.slane %v66, %v70
    %v77 = vunpack.c.l.b16 %v62
    %v78 = vunpack.c.l.b16 %v63
    %v79 = vunpack.c.l.b16 %v64
    %v80 = vunpack.c.l.b16 %v65
    %v81 = vpack.c.b16 %v78, %v77
    %v82 = vpack.c.b16 %v80, %v79
    %vm85 = vcmask 261120
    %v87 = vsel %vm85, %v61, 0
    %89 = vmatprep.subr.bf16.mxu0 0
    %90 = vmatpush1.bf16.msra.mxu0 0
    %91 = vmatprep.subr.bf16.mxu0 0
    %92 = vmatpush1.bf16.msra.mxu0 0
    %93 = vmatprep.subr.bf16.mxu0 0
    %94 = vmatpush1.bf16.msra.mxu0 0
    %95 = vmatprep.subr.bf16.mxu0 0
    %96 = vmatpush1.bf16.msra.mxu0 0
    %97 = vmatprep.subr.bf16.mxu0 0
    %98 = vmatpush1.bf16.msra.mxu0 0
    %99 = vmatprep.subr.bf16.mxu0 0
    %100 = vmatpush1.bf16.msra.mxu0 0
    %101 = vmatprep.subr.bf16.mxu0 0
    %102 = vmatpush1.bf16.msra.mxu0 %v82
    %103 = vmatprep.subr.bf16.mxu0 0
    %104 = vmatpush1.bf16.msra.mxu0 %v81
    %105 = vmatprep.subr.bf16.mxu0 0
    %106 = vmatpush2.bf16.msra.mxu0 0
    %107 = vmatprep.subr.bf16.mxu0 0
    %108 = vmatpush2.bf16.msra.mxu0 0
    %109 = vmatprep.subr.bf16.mxu0 0
    %110 = vmatpush2.bf16.msra.mxu0 0
    %111 = vmatprep.subr.bf16.mxu0 0
    %112 = vmatpush2.bf16.msra.mxu0 0
    %113 = vmatprep.subr.bf16.mxu0 0
    %114 = vmatpush2.bf16.msra.mxu0 0
    %115 = vmatprep.subr.bf16.mxu0 0
    %116 = vmatpush2.bf16.msra.mxu0 0
    %117 = vmatprep.subr.bf16.mxu0 0
    %118 = vmatpush2.bf16.msra.mxu0 0
    %119 = vmatprep.subr.bf16.mxu0 0
    %120 = vmatpush2.bf16.msra.mxu0 0
    %121 = vmatprep.mubr.bf16.mxu0 0
    %122 = vmatmul.mubr.bf16.gmra.mxu0 %v87
    %v123 = vpop.f32.mrf.mxu0
    %v124 = vadd.f32 %v71, %v123
    %v125 = vpop.f32.mrf.mxu0
    %v126 = vpop.f32.mrf.mxu0
    %v127 = vpop.f32.mrf.mxu0
    %128 = vdwg.mxu0
    %v129 = vmax.f32 %v124, 0.0
    %v130 = vpack.c.bf16 %v129, %v129
    %v131 = vld [vmem:[#allocation6] sm:$0xf]
    %v132 = vld [vmem:[#allocation6 + $0x4] sm:$0xf]
    %v133 = vld [vmem:[#allocation6 + $0x8] sm:$0xf]
    %v134 = vld [vmem:[#allocation6 + $0xc] sm:$0xf]
    %v135 = vld [vmem:[#allocation6 + $0x10] sm:$0xf]
    %v136 = vld [vmem:[#allocation6 + $0x14] sm:$0xf]
    %v137 = vld [vmem:[#allocation6 + $0x18] sm:$0xf]
    %v138 = vld [vmem:[#allocation6 + $0x1c] sm:$0xf]
    %v139 = vld [vmem:[#allocation6 + $0x20] sm:$0xf]
    %v140 = vld [vmem:[#allocation6 + $0x24] sm:$0xf]
    %v141 = vld [vmem:[#allocation6 + $0x28] sm:$0xf]
    %v142 = vld [vmem:[#allocation6 + $0x2c] sm:$0xf]
    %v143 = vld [vmem:[#allocation6 + $0x30] sm:$0xf]
    %v144 = vld [vmem:[#allocation6 + $0x34] sm:$0xf]
    %v145 = vld [vmem:[#allocation6 + $0x38] sm:$0xf]
    %v146 = vld [vmem:[#allocation6 + $0x3c] sm:$0xf]
    %v147 = vld [vmem:[%s4] sm:$0x1]
    %v149 = vlaneseq
    %v150 = vshrl.u32 %v149, 7
    %v151 = vsub.s32 0, %v150
    %v152 = vrot.slane %v147, %v151
    %v170 = vunpack.c.l.b16 %v131
    %v171 = vunpack.c.l.b16 %v132
    %v172 = vunpack.c.l.b16 %v133
    %v173 = vunpack.c.l.b16 %v134
    %v174 = vunpack.c.l.b16 %v135
    %v175 = vunpack.c.l.b16 %v136
    %v176 = vunpack.c.l.b16 %v137
    %v177 = vunpack.c.l.b16 %v138
    %v178 = vunpack.c.l.b16 %v139
    %v179 = vunpack.c.l.b16 %v140
    %v180 = vunpack.c.l.b16 %v141
    %v181 = vunpack.c.l.b16 %v142
    %v182 = vunpack.c.l.b16 %v143
    %v183 = vunpack.c.l.b16 %v144
    %v184 = vunpack.c.l.b16 %v145
    %v185 = vunpack.c.l.b16 %v146
    %v186 = vpack.c.b16 %v171, %v170
    %v187 = vpack.c.b16 %v173, %v172
    %v188 = vpack.c.b16 %v175, %v174
    %v189 = vpack.c.b16 %v177, %v176
    %v190 = vpack.c.b16 %v179, %v178
    %v191 = vpack.c.b16 %v181, %v180
    %v192 = vpack.c.b16 %v183, %v182
    %v193 = vpack.c.b16 %v185, %v184
    %202 = vmatprep.subr.bf16.mxu0 0
    %203 = vmatpush1.bf16.msra.mxu0 %v193
    %204 = vmatprep.subr.bf16.mxu0 0
    %205 = vmatpush1.bf16.msra.mxu0 %v192
    %206 = vmatprep.subr.bf16.mxu0 0
    %207 = vmatpush1.bf16.msra.mxu0 %v191
    %208 = vmatprep.subr.bf16.mxu0 0
    %209 = vmatpush1.bf16.msra.mxu0 %v190
    %210 = vmatprep.subr.bf16.mxu0 0
    %211 = vmatpush1.bf16.msra.mxu0 %v189
    %212 = vmatprep.subr.bf16.mxu0 0
    %213 = vmatpush1.bf16.msra.mxu0 %v188
    %214 = vmatprep.subr.bf16.mxu0 0
    %215 = vmatpush1.bf16.msra.mxu0 %v187
    %216 = vmatprep.subr.bf16.mxu0 0
    %217 = vmatpush1.bf16.msra.mxu0 %v186
    %218 = vmatprep.subr.bf16.mxu0 0
    %219 = vmatpush2.bf16.msra.mxu0 0
    %220 = vmatprep.subr.bf16.mxu0 0
    %221 = vmatpush2.bf16.msra.mxu0 0
    %222 = vmatprep.subr.bf16.mxu0 0
    %223 = vmatpush2.bf16.msra.mxu0 0
    %224 = vmatprep.subr.bf16.mxu0 0
    %225 = vmatpush2.bf16.msra.mxu0 0
    %226 = vmatprep.subr.bf16.mxu0 0
    %227 = vmatpush2.bf16.msra.mxu0 0
    %228 = vmatprep.subr.bf16.mxu0 0
    %229 = vmatpush2.bf16.msra.mxu0 0
    %230 = vmatprep.subr.bf16.mxu0 0
    %231 = vmatpush2.bf16.msra.mxu0 0
    %232 = vmatprep.subr.bf16.mxu0 0
    %233 = vmatpush2.bf16.msra.mxu0 0
    %234 = vmatprep.mubr.bf16.mxu0 0
    %235 = vmatmul.mubr.bf16.gmra.mxu0 %v130
    %v236 = vpop.f32.mrf.mxu0
    %v237 = vadd.f32 %v152, %v236
    %v238 = vpop.f32.mrf.mxu0
    %v239 = vpop.f32.mrf.mxu0
    %v240 = vpop.f32.mrf.mxu0
    %241 = vdwg.mxu0
    %242 = vst [vmem:[%s5] sm:$0xff] %v237
    // Predicated region
    $region34: #{mlp_forward.1} parent=1 // pred_check
      _
    $region35: #{mlp_forward.1} parent=1 // pred_check_branch
      %244 = sbr.rel (0) target = $region37
    $region36: #{mlp_forward.1} parent=1 // pred_region
      _
    $region37: #{mlp_forward.1} parent=1 // pred_fallthru
      _
    // Predicated region
    $region38: #{mlp_forward.1} parent=1 // pred_check
      _
    $region39: #{mlp_forward.1} parent=1 // pred_check_branch
      %246 = sbr.rel (0) target = $region41
    $region40: #{mlp_forward.1} parent=1 // pred_region
      _
    $region41: #{mlp_forward.1} parent=1 // pred_fallthru
      _
    %247 = vsyncpa [#allocation3], 1
    %248 = vsyncpa [#allocation5], 1

</llo_original>
